<compile_context>
chip_gen: v7x
topology: tpu7x:2x2x1
jax: 0.10.0
libtpu: 0.0.40
codegen_flags: <defaults>
</compile_context>

<pallas_src>
import functools

import jax
import jax.numpy as jnp
from jax.experimental import pallas as pl
from jax.experimental.pallas import tpu as pltpu


_LANES = 128
# ~2 MiB blocks: large enough that the ~0.35us per-grid-step cost is <10% on
# v6e/v7x, small enough that 2x(in)+2x(out) double buffers fit v5e's 16 MiB
# scoped-VMEM default.  Raise per-call via target_block_bytes on v6e/v7x.
_TARGET_BLOCK_BYTES = 2 << 20


# ------------------------------- Pallas kernel -------------------------------

def _gn_silu_kernel(x_ref, g_ref, b_ref, o_ref, *, act, eps, inv_d):
    # x block: (tb, tg, Ds, 128) in the input's native dtype.
    x = x_ref[...].astype(jnp.float32)                 # in-vreg upcast
    # One-pass statistics (accumulated in f32): sum, sum-of-squares.
    s1 = jnp.sum(x, axis=-1, keepdims=True)            # lane reduce
    s1 = jnp.sum(s1, axis=-2, keepdims=True)           # sublane reduce
    s2 = jnp.sum(x * x, axis=-1, keepdims=True)
    s2 = jnp.sum(s2, axis=-2, keepdims=True)
    mean = s1 * inv_d
    # Clamp: E[x^2] - mean^2 can go slightly negative from f32 cancellation.
    var = jnp.maximum(s2 * inv_d - mean * mean, 0.0)
    inv_std = jax.lax.rsqrt(var + eps)                 # EUP
    y = (x - mean) * inv_std
    y = y * g_ref[...][None] + b_ref[...][None]        # per-channel affine
    if act:
        y = y * jax.nn.sigmoid(y)                      # SiLU (sigmoid on EUP)
    o_ref[...] = y.astype(o_ref.dtype)                 # store in native dtype


# ------------------------------ tiling heuristic ------------------------------

def _divisors_desc(n):
    return [d for d in range(n, 0, -1) if n % d == 0]


def _pick_tiles(n, g, row_bytes, target_bytes):
    """Pick (tb, tg) batch/group tiles.

    row_bytes = bytes of one (batch, group) row (Dp * itemsize).  Choose the
    largest block under target_bytes, then shrink (batch axis first, so the
    affine slab stays resident) until the grid has >= 2 steps when possible
    (v7x megacore + pipelining).
    """
    tg = next((t for t in _divisors_desc(g) if t * row_bytes <= target_bytes), 1)
    tb = next((t for t in _divisors_desc(n) if t * tg * row_bytes <= target_bytes), 1)
    if (n // tb) * (g // tg) < 2:
        if n >= 2:
            tb = max(t for t in _divisors_desc(n) if n // t >= 2)
        elif g >= 2:
            tg = max(t for t in _divisors_desc(g) if g // t >= 2)
    return tb, tg


# ---------------------------------- wrapper ----------------------------------

@functools.partial(
    jax.jit,
    static_argnames=("groups", "nonlinearity", "eps", "target_block_bytes"))
def gn_silu(x, gamma, beta, *, groups=8, nonlinearity=True, eps=1e-5,
            target_block_bytes=_TARGET_BLOCK_BYTES):
    """GNSiLU.forward: GroupNorm(groups, C)(x) followed by optional SiLU.

    x: (N, C, *spatial) in any float dtype; gamma/beta: (C,) affine params.
    Output has the same shape and dtype as x.
    """
    N, C = x.shape[0], x.shape[1]
    assert C % groups == 0, (C, groups)
    Cg = C // groups
    L = 1
    for s in x.shape[2:]:
        L *= s
    D = Cg * L                                          # elements per group
    Dp = ((D + _LANES - 1) // _LANES) * _LANES          # lane-dense padded D
    Ds = Dp // _LANES
    itemsize = x.dtype.itemsize

    xg = x.reshape(N, groups, D)
    if Dp != D:
        # TODO(synk): odd Cg*H*W takes a wrapper-side pad/slice copy; an
        # in-kernel masked tail would avoid the extra HBM pass.
        xg = jnp.pad(xg, ((0, 0), (0, 0), (0, Dp - D)))
    xg = xg.reshape(N, groups, Ds, _LANES)

    # Per-channel affine expanded to the lane-dense (G, Ds, 128) layout.  With
    # allow_input_fusion below (and this wrapper jitted), XLA fuses this
    # broadcast straight into the pallas_call operand instead of writing it to
    # HBM.  Zero padding keeps the padded tail finite (sliced off afterwards).
    def _expand(p):
        p = jnp.broadcast_to(p.reshape(groups, Cg, 1).astype(jnp.float32),
                             (groups, Cg, L)).reshape(groups, D)
        if Dp != D:
            p = jnp.pad(p, ((0, 0), (0, Dp - D)))
        return p.reshape(groups, Ds, _LANES)

    gb = _expand(gamma)
    bb = _expand(beta)

    tb, tg = _pick_tiles(N, groups, Dp * itemsize, target_block_bytes)

    # Raise the scoped-VMEM limit only if a single block is forced past the
    # target (one (batch, group) row bigger than the budget).
    blk_bytes = tb * tg * Dp * itemsize
    par_bytes = tg * Dp * 4
    vmem_need = 4 * blk_bytes + 4 * par_bytes + (1 << 20)
    cp_kwargs = dict(
        dimension_semantics=("parallel", "parallel"),
        allow_input_fusion=[False, True, True],
    )
    if vmem_need > (12 << 20):
        cp_kwargs["vmem_limit_bytes"] = int(min(vmem_need, 48 << 20))

    elems = N * groups * Dp
    cost = pl.CostEstimate(
        flops=int(10 * elems),
        transcendentals=int((elems if nonlinearity else 0) + N * groups),
        bytes_accessed=int(2 * elems * itemsize + 2 * groups * Dp * 4),
    )

    out = pl.pallas_call(
        functools.partial(_gn_silu_kernel, act=nonlinearity, eps=eps,
                          inv_d=1.0 / D),
        out_shape=jax.ShapeDtypeStruct((N, groups, Ds, _LANES), x.dtype),
        grid=(N // tb, groups // tg),
        in_specs=[
            pl.BlockSpec((tb, tg, Ds, _LANES), lambda nb, gb: (nb, gb, 0, 0)),
            pl.BlockSpec((tg, Ds, _LANES), lambda nb, gb: (gb, 0, 0)),
            pl.BlockSpec((tg, Ds, _LANES), lambda nb, gb: (gb, 0, 0)),
        ],
        out_specs=pl.BlockSpec((tb, tg, Ds, _LANES),
                               lambda nb, gb: (nb, gb, 0, 0)),
        compiler_params=pltpu.CompilerParams(**cp_kwargs),
        cost_estimate=cost,
    )(xg, gb, bb)

    if Dp != D:
        out = out.reshape(N, groups, Dp)[:, :, :D]
    return out.reshape(x.shape)


# ----------------------------- pure-JAX reference -----------------------------

def gn_silu_ref(x, gamma, beta, groups, nonlinearity, eps=1e-5):
    N, C = x.shape[0], x.shape[1]
    xg = x.reshape(N, groups, -1)
    m = jnp.mean(xg, axis=-1, keepdims=True)
    v = jnp.mean((xg - m) ** 2, axis=-1, keepdims=True)
    y = (xg - m) / jnp.sqrt(v + eps)
    y = y.reshape(N, C, -1) * gamma[None, :, None] + beta[None, :, None]
    if nonlinearity:
        y = y * jax.nn.sigmoid(y)
    return y.reshape(x.shape)


# ----------------------------------- demo -----------------------------------

if __name__ == "__main__":
    # Channels must be divisible by groupHead=8.
    B, C, H, W = 2, 32, 16, 16
    G = 8

    key = jax.random.PRNGKey(0)
    kx, kg, kb = jax.random.split(key, 3)
    x = jax.random.normal(kx, (B, C, H, W), dtype=jnp.float32)

    # Case 1: module as constructed (nonlinearity=True, init_zero=False):
    # GroupNorm weight = 1, bias = 0, followed by SiLU.
    gamma1 = jnp.ones((C,), jnp.float32)
    beta1 = jnp.zeros((C,), jnp.float32)
    out1 = jax.block_until_ready(gn_silu(x, gamma1, beta1, groups=G,
                                         nonlinearity=True))
    ref1 = gn_silu_ref(x, gamma1, beta1, G, True)
    assert out1.shape == (B, C, H, W), out1.shape
    assert out1.dtype == x.dtype
    assert bool(jnp.all(jnp.isfinite(out1)))
    assert bool(jnp.allclose(out1, ref1, atol=1e-4, rtol=1e-4)), \
        float(jnp.max(jnp.abs(out1 - ref1)))

    # Case 2: learned affine params, no activation.
    gamma2 = 1.0 + 0.1 * jax.random.normal(kg, (C,), jnp.float32)
    beta2 = 0.1 * jax.random.normal(kb, (C,), jnp.float32)
    out2 = jax.block_until_ready(gn_silu(x, gamma2, beta2, groups=G,
                                         nonlinearity=False))
    ref2 = gn_silu_ref(x, gamma2, beta2, G, False)
    assert bool(jnp.allclose(out2, ref2, atol=1e-4, rtol=1e-4)), \
        float(jnp.max(jnp.abs(out2 - ref2)))

    # Case 3: native bf16 I/O (no wrapper cast round-trip, f32 in-kernel stats).
    xb = x.astype(jnp.bfloat16)
    out3 = jax.block_until_ready(gn_silu(xb, gamma2, beta2, groups=G,
                                         nonlinearity=True))
    assert out3.dtype == jnp.bfloat16
    ref3 = gn_silu_ref(xb.astype(jnp.float32), gamma2, beta2, G, True)
    assert bool(jnp.allclose(out3.astype(jnp.float32), ref3,
                             atol=5e-2, rtol=5e-2)), \
        float(jnp.max(jnp.abs(out3.astype(jnp.float32) - ref3)))

    # Case 4: Cg*H*W not a multiple of 128 -> padded lane-dense path.
    x4 = jax.random.normal(kx, (2, 16, 5, 5), dtype=jnp.float32)
    g4 = jnp.ones((16,), jnp.float32)
    b4 = jnp.zeros((16,), jnp.float32)
    out4 = jax.block_until_ready(gn_silu(x4, g4, b4, groups=G,
                                         nonlinearity=True))
    ref4 = gn_silu_ref(x4, g4, b4, G, True)
    assert out4.shape == x4.shape
    assert bool(jnp.allclose(out4, ref4, atol=1e-4, rtol=1e-4)), \
        float(jnp.max(jnp.abs(out4 - ref4)))

    print("KERNEL_OK")
</pallas_src>

<mosaic_0001>
module attributes {stable_mosaic.version = 11 : i64} {
  func.func @_gn_silu_kernel(%arg0: i32, %arg1: i32, %arg2: memref<1x8x8x128xf32, #tpu.memory_space<vmem>>, %arg3: memref<8x8x128xf32, #tpu.memory_space<vmem>>, %arg4: memref<8x8x128xf32, #tpu.memory_space<vmem>>, %arg5: memref<1x8x8x128xf32, #tpu.memory_space<vmem>>) attributes {dimension_semantics = [#tpu.dimension_semantics<parallel>, #tpu.dimension_semantics<parallel>], iteration_bounds = array<i64: 2, 1>, scalar_prefetch = 0 : i64, scratch_operands = 0 : i64, tpu.core_type = #tpu.core_type<tc>, window_params = [{transform_indices = @transform_0, window_bounds = array<i64: 1, 8, 8, 128>}, {transform_indices = @transform_1, window_bounds = array<i64: 8, 8, 128>}, {transform_indices = @transform_2, window_bounds = array<i64: 8, 8, 128>}, {transform_indices = @transform_3, window_bounds = array<i64: 1, 8, 8, 128>}]} {
    %c0 = arith.constant 0 : index
    %c0_0 = arith.constant 0 : index
    %c0_1 = arith.constant 0 : index
    %c0_2 = arith.constant 0 : index
    %0 = vector.load %arg2[%c0, %c0_0, %c0_1, %c0_2] : memref<1x8x8x128xf32, #tpu.memory_space<vmem>>, vector<1x8x8x128xf32>
    %cst = arith.constant dense<0.000000e+00> : vector<1x8x8xf32>
    %1 = vector.multi_reduction <add>, %0, %cst [3] : vector<1x8x8x128xf32> to vector<1x8x8xf32>
    %2 = vector.shape_cast %1 : vector<1x8x8xf32> to vector<1x8x8x1xf32>
    %cst_3 = arith.constant dense<0.000000e+00> : vector<1x8x1xf32>
    %3 = vector.multi_reduction <add>, %2, %cst_3 [2] : vector<1x8x8x1xf32> to vector<1x8x1xf32>
    %4 = vector.shape_cast %3 : vector<1x8x1xf32> to vector<1x8x1x1xf32>
    %5 = arith.mulf %0, %0 : vector<1x8x8x128xf32>
    %cst_4 = arith.constant dense<0.000000e+00> : vector<1x8x8xf32>
    %6 = vector.multi_reduction <add>, %5, %cst_4 [3] : vector<1x8x8x128xf32> to vector<1x8x8xf32>
    %7 = vector.shape_cast %6 : vector<1x8x8xf32> to vector<1x8x8x1xf32>
    %cst_5 = arith.constant dense<0.000000e+00> : vector<1x8x1xf32>
    %8 = vector.multi_reduction <add>, %7, %cst_5 [2] : vector<1x8x8x1xf32> to vector<1x8x1xf32>
    %9 = vector.shape_cast %8 : vector<1x8x1xf32> to vector<1x8x1x1xf32>
    %cst_6 = arith.constant 9.765625E-4 : f32
    %10 = vector.broadcast %cst_6 : f32 to vector<1x8x1x1xf32>
    %11 = arith.mulf %4, %10 : vector<1x8x1x1xf32>
    %cst_7 = arith.constant 9.765625E-4 : f32
    %12 = vector.broadcast %cst_7 : f32 to vector<1x8x1x1xf32>
    %13 = arith.mulf %9, %12 : vector<1x8x1x1xf32>
    %14 = arith.mulf %11, %11 : vector<1x8x1x1xf32>
    %15 = arith.subf %13, %14 : vector<1x8x1x1xf32>
    %cst_8 = arith.constant 0.000000e+00 : f32
    %16 = vector.broadcast %cst_8 : f32 to vector<1x8x1x1xf32>
    %17 = arith.maximumf %15, %16 : vector<1x8x1x1xf32>
    %cst_9 = arith.constant 9.99999974E-6 : f32
    %18 = vector.broadcast %cst_9 : f32 to vector<1x8x1x1xf32>
    %19 = arith.addf %17, %18 : vector<1x8x1x1xf32>
    %20 = math.rsqrt %19 : vector<1x8x1x1xf32>
    %21 = vector.broadcast %11 : vector<1x8x1x1xf32> to vector<1x8x8x128xf32>
    %22 = arith.subf %0, %21 : vector<1x8x8x128xf32>
    %23 = vector.broadcast %20 : vector<1x8x1x1xf32> to vector<1x8x8x128xf32>
    %24 = arith.mulf %22, %23 : vector<1x8x8x128xf32>
    %c0_10 = arith.constant 0 : index
    %c0_11 = arith.constant 0 : index
    %c0_12 = arith.constant 0 : index
    %25 = vector.load %arg3[%c0_10, %c0_11, %c0_12] : memref<8x8x128xf32, #tpu.memory_space<vmem>>, vector<8x8x128xf32>
    %26 = vector.shape_cast %25 : vector<8x8x128xf32> to vector<1x8x8x128xf32>
    %27 = arith.mulf %24, %26 : vector<1x8x8x128xf32>
    %c0_13 = arith.constant 0 : index
    %c0_14 = arith.constant 0 : index
    %c0_15 = arith.constant 0 : index
    %28 = vector.load %arg4[%c0_13, %c0_14, %c0_15] : memref<8x8x128xf32, #tpu.memory_space<vmem>>, vector<8x8x128xf32>
    %29 = vector.shape_cast %28 : vector<8x8x128xf32> to vector<1x8x8x128xf32>
    %30 = arith.addf %27, %29 : vector<1x8x8x128xf32>
    %31 = arith.negf %30 : vector<1x8x8x128xf32>
    %32 = math.exp %31 : vector<1x8x8x128xf32>
    %cst_16 = arith.constant 1.000000e+00 : f32
    %33 = vector.broadcast %cst_16 : f32 to vector<1x8x8x128xf32>
    %34 = arith.addf %33, %32 : vector<1x8x8x128xf32>
    %35 = arith.divf %33, %34 : vector<1x8x8x128xf32>
    %36 = arith.mulf %30, %35 : vector<1x8x8x128xf32>
    %c0_17 = arith.constant 0 : index
    %c0_18 = arith.constant 0 : index
    %c0_19 = arith.constant 0 : index
    %c0_20 = arith.constant 0 : index
    %37 = vector.load %arg5[%c0_17, %c0_18, %c0_19, %c0_20] : memref<1x8x8x128xf32, #tpu.memory_space<vmem>>, vector<1x8x8x128xf32>
    tpu.vector_store %arg5[%c0_17, %c0_18, %c0_19, %c0_20], %36 {strides = array<i32>} : memref<1x8x8x128xf32, #tpu.memory_space<vmem>>, vector<1x8x8x128xf32>,
    return
  }
  func.func @transform_0(%arg0: i32, %arg1: i32) -> (i32, i32, i32, i32) {
    %c0_i32 = arith.constant 0 : i32
    %c0_i32_0 = arith.constant 0 : i32
    %c0_i32_1 = arith.constant 0 : i32
    return %arg0, %arg1, %c0_i32, %c0_i32_0 : i32, i32, i32, i32
  }
  func.func @transform_1(%arg0: i32, %arg1: i32) -> (i32, i32, i32) {
    %c0_i32 = arith.constant 0 : i32
    %c0_i32_0 = arith.constant 0 : i32
    %c0_i32_1 = arith.constant 0 : i32
    return %arg1, %c0_i32, %c0_i32_0 : i32, i32, i32
  }
  func.func @transform_2(%arg0: i32, %arg1: i32) -> (i32, i32, i32) {
    %c0_i32 = arith.constant 0 : i32
    %c0_i32_0 = arith.constant 0 : i32
    %c0_i32_1 = arith.constant 0 : i32
    return %arg1, %c0_i32, %c0_i32_0 : i32, i32, i32
  }
  func.func @transform_3(%arg0: i32, %arg1: i32) -> (i32, i32, i32, i32) {
    %c0_i32 = arith.constant 0 : i32
    %c0_i32_0 = arith.constant 0 : i32
    %c0_i32_1 = arith.constant 0 : i32
    return %arg0, %arg1, %c0_i32, %c0_i32_0 : i32, i32, i32, i32
  }
}

</mosaic_0001>

<llo_original>
// kernel: gn_silu.2
$region0: #{gn_silu.2}
  #allocation0 [shape = 'u32[]', space=smem, size = 0x4, offset = 0x4, fixed_abs, tag = 'smem constant byte address 0x4 - core index']
  #allocation1 [shape = 'u32[144,128]{1,0:T(1,128)}', space=vmem, size = 0x12000, scoped, tag = 'internal scratch']
  %s0 = inlined_call_operand.vmem [shape: f32[2,8,8,128], index: 0, kind: input, shape index: {}]
  %s1 = inlined_call_operand.vmem [shape: f32[8,8], index: 1, kind: input, shape index: {}]
  %s2 = inlined_call_operand.vmem [shape: f32[8,8], index: 2, kind: input, shape index: {}]
  %s3 = inlined_call_operand.vmem [shape: f32[2,8,8,128], index: 3, kind: output, shape index: {}]
  %s4 = sld [smem:[#allocation0]]
  $region45: #{gn_silu.2} parent=0
    _
  %s6 = ssub.s32 1, %s4
  %s7 = scalar_select 0, %s6, %s4
  loop: start=0, step=1, limit=4
  $region2: #{gn_silu.2} parent=0 // loop_pre_header
    _
  $region3: #{gn_silu.2} parent=0 // loop_header
    %s9 = sphi 0, %s13
    %p10 = scmp.ge.s32.totalorder %s9, 4
    %s16 = sphi 0, %s28
    %s17 = sphi 0, %s24
    %s18 = sphi 0, %s16
    %s19 = sphi 0, %s17
    %s20 = sphi 0, %s18
    %s21 = sphi 0, %s19
    %s33 = sphi 0, %s35
    %s36 = sphi 0, %s33
    %s37 = sphi 0, %s36
    %s53 = sphi 0, %s37
    %s63 = sphi 0, %s65
    %s66 = sphi 0, %s63
    %s67 = sphi 0, %s66
    %s83 = sphi 0, %s67
    %s93 = sphi 0, %s95
    %s96 = sphi 0, %s93
    %s97 = sphi 0, %s96
    %s113 = sphi 0, %s97
    %s121 = sphi 0, %s123
    %s124 = sphi 0, %s121
    %s125 = sphi 0, %s124
    %s141 = sphi 0, %s125
  $region4: #{gn_silu.2} parent=0 // loop_header_branch
    %12 = sbr.rel (%p10) target = $region8
  $region5: #{gn_silu.2} parent=0 // loop_body
    %s14 = ssub.s32 %s9, 1
    %s15 = ssub.s32 %s9, 2
    %s22 = sadd.s32 1, %s17
    %p23 = scmp.ge.s32.totalorder %s22, 1
    %s24 = scalar_select %p23, 0, %s22
    %s25 = sadd.s32 1, %s16
    %s26 = scalar_select %p23, %s25, %s16
    %p27 = scmp.ge.s32.totalorder %s26, 2
    %s28 = scalar_select %p27, 0, %s26
    %s29 = ssub.s32 %s16, %s28
    %s30 = ssub.s32 %s17, %s24
    %s31 = sor.u32 %s29, %s30
    %p32 = scmp.eq.s32.totalorder %s31, 0
    %s34 = sadd.s32 %s33, 1
    %s35 = scalar_select %p32, %s33, %s34
    %p38 = pneg %p32
    %p39 = scmp.eq.s32.totalorder %s9, 1
    %p40 = por %p38, %p39
    %p41 = scmp.ne.s32.totalorder %s33, %s36
    %p42 = scmp.eq.s32.totalorder %s9, 0
    %p43 = por %p41, %p42
    %p44 = scmp.ne.s32.totalorder %s33, %s36
    %p45 = scmp.eq.s32.totalorder %s14, 1
    %p46 = por %p44, %p45
    %p47 = scmp.ne.s32.totalorder %s36, %s37
    %p48 = scmp.eq.s32.totalorder %s14, 0
    %p49 = por %p47, %p48
    %p50 = scmp.ne.s32.totalorder %s36, %s37
    %p51 = scmp.eq.s32.totalorder %s15, 1
    %p52 = por %p50, %p51
    %p54 = scmp.ne.s32.totalorder %s37, %s53
    %p55 = scmp.eq.s32.totalorder %s15, 0
    %p56 = por %p54, %p55
    %s57 = smul.addr %s17, 8
    %s58 = sshrl.u32 %s57, 3
    %s59 = smul.addr %s24, 8
    %s60 = sshrl.u32 %s59, 3
    %s61 = ssub.s32 %s58, %s60
    %p62 = scmp.eq.s32.totalorder %s61, 0
    %s64 = sadd.s32 %s63, 1
    %s65 = scalar_select %p62, %s63, %s64
    %p68 = pneg %p62
    %p69 = scmp.eq.s32.totalorder %s9, 1
    %p70 = por %p68, %p69
    %p71 = scmp.ne.s32.totalorder %s63, %s66
    %p72 = scmp.eq.s32.totalorder %s9, 0
    %p73 = por %p71, %p72
    %p74 = scmp.ne.s32.totalorder %s63, %s66
    %p75 = scmp.eq.s32.totalorder %s14, 1
    %p76 = por %p74, %p75
    %p77 = scmp.ne.s32.totalorder %s66, %s67
    %p78 = scmp.eq.s32.totalorder %s14, 0
    %p79 = por %p77, %p78
    %p80 = scmp.ne.s32.totalorder %s66, %s67
    %p81 = scmp.eq.s32.totalorder %s15, 1
    %p82 = por %p80, %p81
    %p84 = scmp.ne.s32.totalorder %s67, %s83
    %p85 = scmp.eq.s32.totalorder %s15, 0
    %p86 = por %p84, %p85
    %s87 = smul.addr %s17, 8
    %s88 = sshrl.u32 %s87, 3
    %s89 = smul.addr %s24, 8
    %s90 = sshrl.u32 %s89, 3
    %s91 = ssub.s32 %s88, %s90
    %p92 = scmp.eq.s32.totalorder %s91, 0
    %s94 = sadd.s32 %s93, 1
    %s95 = scalar_select %p92, %s93, %s94
    %p98 = pneg %p92
    %p99 = scmp.eq.s32.totalorder %s9, 1
    %p100 = por %p98, %p99
    %p101 = scmp.ne.s32.totalorder %s93, %s96
    %p102 = scmp.eq.s32.totalorder %s9, 0
    %p103 = por %p101, %p102
    %p104 = scmp.ne.s32.totalorder %s93, %s96
    %p105 = scmp.eq.s32.totalorder %s14, 1
    %p106 = por %p104, %p105
    %p107 = scmp.ne.s32.totalorder %s96, %s97
    %p108 = scmp.eq.s32.totalorder %s14, 0
    %p109 = por %p107, %p108
    %p110 = scmp.ne.s32.totalorder %s96, %s97
    %p111 = scmp.eq.s32.totalorder %s15, 1
    %p112 = por %p110, %p111
    %p114 = scmp.ne.s32.totalorder %s97, %s113
    %p115 = scmp.eq.s32.totalorder %s15, 0
    %p116 = por %p114, %p115
    %s117 = ssub.s32 %s16, %s28
    %s118 = ssub.s32 %s17, %s24
    %s119 = sor.u32 %s117, %s118
    %p120 = scmp.eq.s32.totalorder %s119, 0
    %s122 = sadd.s32 %s121, 1
    %s123 = scalar_select %p120, %s121, %s122
    %p126 = pneg %p120
    %p127 = scmp.eq.s32.totalorder %s9, 1
    %p128 = por %p126, %p127
    %p129 = scmp.ne.s32.totalorder %s121, %s124
    %p130 = scmp.eq.s32.totalorder %s9, 0
    %p131 = por %p129, %p130
    %p132 = scmp.ne.s32.totalorder %s121, %s124
    %p133 = scmp.eq.s32.totalorder %s14, 1
    %p134 = por %p132, %p133
    %p135 = scmp.ne.s32.totalorder %s124, %s125
    %p136 = scmp.eq.s32.totalorder %s14, 0
    %p137 = por %p135, %p136
    %p138 = scmp.ne.s32.totalorder %s124, %s125
    %p139 = scmp.eq.s32.totalorder %s15, 1
    %p140 = por %p138, %p139
    %p142 = scmp.ne.s32.totalorder %s125, %s141
    %p143 = scmp.eq.s32.totalorder %s15, 0
    %p144 = por %p142, %p143
    %p145 = scmp.le.s32.totalorder 1, %s9
    %p146 = scmp.lt.s32.totalorder %s9, 3
    %p147 = pnand %p145, %p146
    %p148 = pneg %p147
    // Predicated region
    $region9: #{gn_silu.2} parent=5 // pred_check
      _
    $region10: #{gn_silu.2} parent=5 // pred_check_branch
      %150 = sbr.rel (%p147) target = $region12
    $region11: #{gn_silu.2} parent=5 // pred_region
      %s151 = ssub.s32 %s9, 1
      // Predicated region
      $region13: #{gn_silu.2} parent=11 // pred_check
        %p152 = pneg %p79
      $region14: #{gn_silu.2} parent=11 // pred_check_branch
        %154 = sbr.rel (%p152) target = $region16
      $region15: #{gn_silu.2} parent=11 // pred_region
        %s155 = smul.addr %s19, 8
        %s156 = sshrl.u32 %s155, 3
        %p157 = scmp.lt.s32.totalorder %s156, 0
        %s158 = scalar_select %p157, %s156, 0
        %s159 = smul.addr %s158, 8
        %s160 = scalar_lea.vmem %s2, %s159
        %s161 = smul.addr %s19, 8
        %s162 = sshrl.u32 %s161, 3
      $region16: #{gn_silu.2} parent=11 // pred_fallthru
        _
      // Predicated region
      $region17: #{gn_silu.2} parent=11 // pred_check
        %p163 = pneg %p109
      $region18: #{gn_silu.2} parent=11 // pred_check_branch
        %165 = sbr.rel (%p163) target = $region20
      $region19: #{gn_silu.2} parent=11 // pred_region
        %s166 = smul.addr %s19, 8
        %s167 = sshrl.u32 %s166, 3
        %p168 = scmp.lt.s32.totalorder %s167, 0
        %s169 = scalar_select %p168, %s167, 0
        %s170 = smul.addr %s169, 8
        %s171 = scalar_lea.vmem %s1, %s170
        %s172 = smul.addr %s19, 8
        %s173 = sshrl.u32 %s172, 3
      $region20: #{gn_silu.2} parent=11 // pred_fallthru
        _
    $region12: #{gn_silu.2} parent=5 // pred_fallthru
      _
    %p174 = scmp.lt.s32.totalorder %s9, 2
    // Predicated region
    $region21: #{gn_silu.2} parent=5 // pred_check
      %p175 = pneg %p174
    $region22: #{gn_silu.2} parent=5 // pred_check_branch
      %177 = sbr.rel (%p175) target = $region24
    $region23: #{gn_silu.2} parent=5 // pred_region
      // Predicated region
      $region25: #{gn_silu.2} parent=23 // pred_check
        %p178 = pneg %p43
      $region26: #{gn_silu.2} parent=23 // pred_check_branch
        %180 = sbr.rel (%p178) target = $region28
      $region27: #{gn_silu.2} parent=23 // pred_region
        %s181 = smul.u32 8, %s17
        %p182 = scmp.lt.s32.totalorder %s16, 1
        %s183 = scalar_select %p182, %s16, 1
        %p184 = scmp.lt.s32.totalorder %s181, 7
        %s185 = scalar_select %p184, %s181, 7
        %s186 = smul.addr %s183, 8
        %s187 = sadd.s32 %s185, %s186
        %s188 = smul.addr %s187, 8
        %s189 = scalar_lea.vmem %s0, %s188
        %s190 = smul.u32 8, %s17
      $region28: #{gn_silu.2} parent=23 // pred_fallthru
        _
    $region24: #{gn_silu.2} parent=5 // pred_fallthru
      _
    %p191 = scmp.le.s32.totalorder 1, %s9
    %p192 = scmp.lt.s32.totalorder %s9, 3
    %p193 = pnand %p191, %p192
    %p194 = pneg %p193
    // Predicated region
    $region29: #{gn_silu.2} parent=5 // pred_check
      _
    $region30: #{gn_silu.2} parent=5 // pred_check_branch
      %196 = sbr.rel (%p193) target = $region32
    $region31: #{gn_silu.2} parent=5 // pred_region
      #allocation2 [shape = 'u8[32768]{0}', space=vmem, size = 0x8000, dematerialized = true, scoped, tag = 'FusionAdapter Buffer %fusion.2 = f32[8,8,128]{2,1,0:T(8,128)} fusion(%param_2.2), kind=kLoop, calls=%fused_computation.2.clone, metadata={op_name="jit(gn_silu)/broadcast_in_dim" stack_frame_id=9}']
      #allocation3 [shape = 'u8[32768]{0}', space=vmem, size = 0x8000, dematerialized = true, scoped, tag = 'FusionAdapter Buffer %fusion.1 = f32[8,8,128]{2,1,0:T(8,128)} fusion(%param_1.1), kind=kLoop, calls=%fused_computation.1.clone, metadata={op_name="jit(gn_silu)/broadcast_in_dim" stack_frame_id=12}']
      %s197 = ssub.s32 %s9, 1
      %s198 = smul.u32 8, %s19
      %p199 = scmp.lt.s32.totalorder %s18, 1
      %s200 = scalar_select %p199, %s18, 1
      %p201 = scmp.lt.s32.totalorder %s198, 7
      %s202 = scalar_select %p201, %s198, 7
      %s203 = smul.addr %s200, 8
      %s204 = sadd.s32 %s202, %s203
      %s205 = smul.addr %s204, 8
      %s206 = scalar_lea.vmem %s0, %s205
      %p207 = pneg %p49
      %p208 = pneg %p46
      %s209 = smul.addr %s19, 8
      %s210 = sshrl.u32 %s209, 3
      %p211 = scmp.lt.s32.totalorder %s210, 0
      %s212 = scalar_select %p211, %s210, 0
      %s213 = smul.addr %s212, 8
      %s214 = scalar_lea.vmem %s2, %s213
      %p215 = pneg %p79
      %p216 = pneg %p76
      %s217 = smul.addr %s19, 8
      %s218 = sshrl.u32 %s217, 3
      %p219 = scmp.lt.s32.totalorder %s218, 0
      %s220 = scalar_select %p219, %s218, 0
      %s221 = smul.addr %s220, 8
      %s222 = scalar_lea.vmem %s1, %s221
      %p223 = pneg %p109
      %p224 = pneg %p106
      %p225 = pneg %p137
      %p226 = pneg %p134
      %s227 = smul.u32 8, %s19
      %p228 = scmp.lt.s32.totalorder %s18, 1
      %s229 = scalar_select %p228, %s18, 1
      %p230 = scmp.lt.s32.totalorder %s227, 7
      %s231 = scalar_select %p230, %s227, 7
      %s232 = smul.addr %s229, 8
      %s233 = sadd.s32 %s231, %s232
      %s234 = smul.addr %s233, 8
      %s235 = scalar_lea.vmem %s3, %s234
      %s236 = smul.u32 8, %s19
      %p237 = scmp.lt.s32.totalorder %s18, 1
      %s238 = scalar_select %p237, %s18, 1
      %p239 = scmp.lt.s32.totalorder %s236, 7
      %s240 = scalar_select %p239, %s236, 7
      %s241 = smul.addr %s238, 8
      %s242 = sadd.s32 %s240, %s241
      %s243 = smul.addr %s242, 8
      %s244 = scalar_lea.vmem %s0, %s243
      %s245 = smul.u32 8, %s19
      %s246 = smul.addr %s19, 8
      %s247 = sshrl.u32 %s246, 3
      %p248 = scmp.lt.s32.totalorder %s247, 0
      %s249 = scalar_select %p248, %s247, 0
      %s250 = smul.addr %s249, 8
      %s251 = scalar_lea.vmem %s2, %s250
      %s252 = smul.addr %s19, 8
      %s253 = sshrl.u32 %s252, 3
      %s254 = smul.addr %s19, 8
      %s255 = sshrl.u32 %s254, 3
      %p256 = scmp.lt.s32.totalorder %s255, 0
      %s257 = scalar_select %p256, %s255, 0
      %s258 = smul.addr %s257, 8
      %s259 = scalar_lea.vmem %s1, %s258
      %s260 = smul.addr %s19, 8
      %s261 = sshrl.u32 %s260, 3
      %s262 = smul.u32 8, %s19
      %p263 = scmp.lt.s32.totalorder %s18, 1
      %s264 = scalar_select %p263, %s18, 1
      %p265 = scmp.lt.s32.totalorder %s262, 7
      %s266 = scalar_select %p265, %s262, 7
      %s267 = smul.addr %s264, 8
      %s268 = sadd.s32 %s266, %s267
      %s269 = smul.addr %s268, 8
      %s270 = scalar_lea.vmem %s3, %s269
      %s271 = smul.u32 8, %s19
      %s272 = smul.addr %s19, 8
      %s273 = smul.addr %s253, 8
      %s274 = scalar_lea.vmem %s2, %s273
      %v275 = vld [vmem:[%s274] ss:$0 sm:$0xff]
      %277 = vbcast.lane.b32.xlu0 %v275, 256
      %v278 = vpop.permute.xlu0 %277
      %280 = vst [vmem:[#allocation2] sm:$0xff] %v278
      %s281 = smul.addr %s253, 8
      %s282 = scalar_lea.vmem %s2, %s281
      %s283 = scalar_lea.vmem %s282, 1
      %v284 = vld [vmem:[%s283] ss:$0 sm:$0xff]
      %286 = vbcast.lane.b32.xlu0 %v284, 256
      %v287 = vpop.permute.xlu0 %286
      %s288 = scalar_lea.vmem [#allocation2], 8
      %290 = vst [vmem:[%s288] sm:$0xff] %v287
      %s291 = smul.addr %s253, 8
      %s292 = scalar_lea.vmem %s2, %s291
      %s293 = scalar_lea.vmem %s292, 2
      %v294 = vld [vmem:[%s293] ss:$0 sm:$0xff]
      %296 = vbcast.lane.b32.xlu0 %v294, 256
      %v297 = vpop.permute.xlu0 %296
      %s298 = scalar_lea.vmem [#allocation2], 16
      %300 = vst [vmem:[%s298] sm:$0xff] %v297
      %s301 = smul.addr %s253, 8
      %s302 = scalar_lea.vmem %s2, %s301
      %s303 = scalar_lea.vmem %s302, 3
      %v304 = vld [vmem:[%s303] ss:$0 sm:$0xff]
      %306 = vbcast.lane.b32.xlu0 %v304, 256
      %v307 = vpop.permute.xlu0 %306
      %s308 = scalar_lea.vmem [#allocation2], 24
      %310 = vst [vmem:[%s308] sm:$0xff] %v307
      %s311 = smul.addr %s253, 8
      %s312 = scalar_lea.vmem %s2, %s311
      %s313 = scalar_lea.vmem %s312, 4
      %v314 = vld [vmem:[%s313] ss:$0 sm:$0xff]
      %316 = vbcast.lane.b32.xlu0 %v314, 256
      %v317 = vpop.permute.xlu0 %316
      %s318 = scalar_lea.vmem [#allocation2], 32
      %320 = vst [vmem:[%s318] sm:$0xff] %v317
      %s321 = smul.addr %s253, 8
      %s322 = scalar_lea.vmem %s2, %s321
      %s323 = scalar_lea.vmem %s322, 5
      %v324 = vld [vmem:[%s323] ss:$0 sm:$0xff]
      %326 = vbcast.lane.b32.xlu0 %v324, 256
      %v327 = vpop.permute.xlu0 %326
      %s328 = scalar_lea.vmem [#allocation2], 40
      %330 = vst [vmem:[%s328] sm:$0xff] %v327
      %s331 = smul.addr %s253, 8
      %s332 = scalar_lea.vmem %s2, %s331
      %s333 = scalar_lea.vmem %s332, 6
      %v334 = vld [vmem:[%s333] ss:$0 sm:$0xff]
      %336 = vbcast.lane.b32.xlu0 %v334, 256
      %v337 = vpop.permute.xlu0 %336
      %s338 = scalar_lea.vmem [#allocation2], 48
      %340 = vst [vmem:[%s338] sm:$0xff] %v337
      %s341 = smul.addr %s253, 8
      %s342 = scalar_lea.vmem %s2, %s341
      %s343 = scalar_lea.vmem %s342, 7
      %v344 = vld [vmem:[%s343] ss:$0 sm:$0xff]
      %346 = vbcast.lane.b32.xlu0 %v344, 256
      %v347 = vpop.permute.xlu0 %346
      %s348 = scalar_lea.vmem [#allocation2], 56
      %350 = vst [vmem:[%s348] sm:$0xff] %v347
      %s351 = smul.addr %s19, 8
      %s352 = smul.addr %s261, 8
      %s353 = scalar_lea.vmem %s1, %s352
      %v354 = vld [vmem:[%s353] ss:$0 sm:$0xff]
      %356 = vbcast.lane.b32.xlu0 %v354, 256
      %v357 = vpop.permute.xlu0 %356
      %359 = vst [vmem:[#allocation3] sm:$0xff] %v357
      %s360 = smul.addr %s261, 8
      %s361 = scalar_lea.vmem %s1, %s360
      %s362 = scalar_lea.vmem %s361, 1
      %v363 = vld [vmem:[%s362] ss:$0 sm:$0xff]
      %365 = vbcast.lane.b32.xlu0 %v363, 256
      %v366 = vpop.permute.xlu0 %365
      %s367 = scalar_lea.vmem [#allocation3], 8
      %369 = vst [vmem:[%s367] sm:$0xff] %v366
      %s370 = smul.addr %s261, 8
      %s371 = scalar_lea.vmem %s1, %s370
      %s372 = scalar_lea.vmem %s371, 2
      %v373 = vld [vmem:[%s372] ss:$0 sm:$0xff]
      %375 = vbcast.lane.b32.xlu0 %v373, 256
      %v376 = vpop.permute.xlu0 %375
      %s377 = scalar_lea.vmem [#allocation3], 16
      %379 = vst [vmem:[%s377] sm:$0xff] %v376
      %s380 = smul.addr %s261, 8
      %s381 = scalar_lea.vmem %s1, %s380
      %s382 = scalar_lea.vmem %s381, 3
      %v383 = vld [vmem:[%s382] ss:$0 sm:$0xff]
      %385 = vbcast.lane.b32.xlu0 %v383, 256
      %v386 = vpop.permute.xlu0 %385
      %s387 = scalar_lea.vmem [#allocation3], 24
      %389 = vst [vmem:[%s387] sm:$0xff] %v386
      %s390 = smul.addr %s261, 8
      %s391 = scalar_lea.vmem %s1, %s390
      %s392 = scalar_lea.vmem %s391, 4
      %v393 = vld [vmem:[%s392] ss:$0 sm:$0xff]
      %395 = vbcast.lane.b32.xlu0 %v393, 256
      %v396 = vpop.permute.xlu0 %395
      %s397 = scalar_lea.vmem [#allocation3], 32
      %399 = vst [vmem:[%s397] sm:$0xff] %v396
      %s400 = smul.addr %s261, 8
      %s401 = scalar_lea.vmem %s1, %s400
      %s402 = scalar_lea.vmem %s401, 5
      %v403 = vld [vmem:[%s402] ss:$0 sm:$0xff]
      %405 = vbcast.lane.b32.xlu0 %v403, 256
      %v406 = vpop.permute.xlu0 %405
      %s407 = scalar_lea.vmem [#allocation3], 40
      %409 = vst [vmem:[%s407] sm:$0xff] %v406
      %s410 = smul.addr %s261, 8
      %s411 = scalar_lea.vmem %s1, %s410
      %s412 = scalar_lea.vmem %s411, 6
      %v413 = vld [vmem:[%s412] ss:$0 sm:$0xff]
      %415 = vbcast.lane.b32.xlu0 %v413, 256
      %v416 = vpop.permute.xlu0 %415
      %s417 = scalar_lea.vmem [#allocation3], 48
      %419 = vst [vmem:[%s417] sm:$0xff] %v416
      %s420 = smul.addr %s261, 8
      %s421 = scalar_lea.vmem %s1, %s420
      %s422 = scalar_lea.vmem %s421, 7
      %v423 = vld [vmem:[%s422] ss:$0 sm:$0xff]
      %425 = vbcast.lane.b32.xlu0 %v423, 256
      %v426 = vpop.permute.xlu0 %425
      %s427 = scalar_lea.vmem [#allocation3], 56
      %429 = vst [vmem:[%s427] sm:$0xff] %v426
      %v430 = vld [vmem:[%s244] sm:$0xff]
      %v431 = vld [vmem:[%s244 + $0x8] sm:$0xff]
      %v432 = vld [vmem:[%s244 + $0x10] sm:$0xff]
      %v433 = vld [vmem:[%s244 + $0x18] sm:$0xff]
      %v434 = vld [vmem:[%s244 + $0x20] sm:$0xff]
      %v435 = vld [vmem:[%s244 + $0x28] sm:$0xff]
      %v436 = vld [vmem:[%s244 + $0x30] sm:$0xff]
      %v437 = vld [vmem:[%s244 + $0x38] sm:$0xff]
      %438 = vadd.xlane.f32.xlu0 %v430
      %v439 = vpop.xlane.xlu0 %438
      %440 = vadd.xlane.f32.xlu0 %v431
      %v441 = vpop.xlane.xlu0 %440
      %442 = vadd.xlane.f32.xlu0 %v432
      %v443 = vpop.xlane.xlu0 %442
      %444 = vadd.xlane.f32.xlu0 %v433
      %v445 = vpop.xlane.xlu0 %444
      %446 = vadd.xlane.f32.xlu0 %v434
      %v447 = vpop.xlane.xlu0 %446
      %448 = vadd.xlane.f32.xlu0 %v435
      %v449 = vpop.xlane.xlu0 %448
      %450 = vadd.xlane.f32.xlu0 %v436
      %v451 = vpop.xlane.xlu0 %450
      %452 = vadd.xlane.f32.xlu0 %v437
      %v453 = vpop.xlane.xlu0 %452
      %v454 = vrot.slane %v439, 4
      %v455 = vadd.f32 %v439, %v454
      %v456 = vrot.slane %v455, 2
      %v457 = vadd.f32 %v455, %v456
      %v458 = vrot.slane %v457, 1
      %v459 = vadd.f32 %v457, %v458
      %v460 = vrot.slane %v441, 4
      %v461 = vadd.f32 %v441, %v460
      %v462 = vrot.slane %v461, 2
      %v463 = vadd.f32 %v461, %v462
      %v464 = vrot.slane %v463, 1
      %v465 = vadd.f32 %v463, %v464
      %v466 = vrot.slane %v443, 4
      %v467 = vadd.f32 %v443, %v466
      %v468 = vrot.slane %v467, 2
      %v469 = vadd.f32 %v467, %v468
      %v470 = vrot.slane %v469, 1
      %v471 = vadd.f32 %v469, %v470
      %v472 = vrot.slane %v445, 4
      %v473 = vadd.f32 %v445, %v472
      %v474 = vrot.slane %v473, 2
      %v475 = vadd.f32 %v473, %v474
      %v476 = vrot.slane %v475, 1
      %v477 = vadd.f32 %v475, %v476
      %v478 = vrot.slane %v447, 4
      %v479 = vadd.f32 %v447, %v478
      %v480 = vrot.slane %v479, 2
      %v481 = vadd.f32 %v479, %v480
      %v482 = vrot.slane %v481, 1
      %v483 = vadd.f32 %v481, %v482
      %v484 = vrot.slane %v449, 4
      %v485 = vadd.f32 %v449, %v484
      %v486 = vrot.slane %v485, 2
      %v487 = vadd.f32 %v485, %v486
      %v488 = vrot.slane %v487, 1
      %v489 = vadd.f32 %v487, %v488
      %v490 = vrot.slane %v451, 4
      %v491 = vadd.f32 %v451, %v490
      %v492 = vrot.slane %v491, 2
      %v493 = vadd.f32 %v491, %v492
      %v494 = vrot.slane %v493, 1
      %v495 = vadd.f32 %v493, %v494
      %v496 = vrot.slane %v453, 4
      %v497 = vadd.f32 %v453, %v496
      %v498 = vrot.slane %v497, 2
      %v499 = vadd.f32 %v497, %v498
      %v500 = vrot.slane %v499, 1
      %v501 = vadd.f32 %v499, %v500
      %v502 = vmul.f32 %v430, %v430
      %v503 = vmul.f32 %v431, %v431
      %v504 = vmul.f32 %v432, %v432
      %v505 = vmul.f32 %v433, %v433
      %v506 = vmul.f32 %v434, %v434
      %v507 = vmul.f32 %v435, %v435
      %v508 = vmul.f32 %v436, %v436
      %v509 = vmul.f32 %v437, %v437
      %510 = vadd.xlane.f32.xlu0 %v502
      %v511 = vpop.xlane.xlu0 %510
      %512 = vadd.xlane.f32.xlu0 %v503
      %v513 = vpop.xlane.xlu0 %512
      %514 = vadd.xlane.f32.xlu0 %v504
      %v515 = vpop.xlane.xlu0 %514
      %516 = vadd.xlane.f32.xlu0 %v505
      %v517 = vpop.xlane.xlu0 %516
      %518 = vadd.xlane.f32.xlu0 %v506
      %v519 = vpop.xlane.xlu0 %518
      %520 = vadd.xlane.f32.xlu0 %v507
      %v521 = vpop.xlane.xlu0 %520
      %522 = vadd.xlane.f32.xlu0 %v508
      %v523 = vpop.xlane.xlu0 %522
      %524 = vadd.xlane.f32.xlu0 %v509
      %v525 = vpop.xlane.xlu0 %524
      %v526 = vrot.slane %v511, 4
      %v527 = vadd.f32 %v511, %v526
      %v528 = vrot.slane %v527, 2
      %v529 = vadd.f32 %v527, %v528
      %v530 = vrot.slane %v529, 1
      %v531 = vadd.f32 %v529, %v530
      %v532 = vrot.slane %v513, 4
      %v533 = vadd.f32 %v513, %v532
      %v534 = vrot.slane %v533, 2
      %v535 = vadd.f32 %v533, %v534
      %v536 = vrot.slane %v535, 1
      %v537 = vadd.f32 %v535, %v536
      %v538 = vrot.slane %v515, 4
      %v539 = vadd.f32 %v515, %v538
      %v540 = vrot.slane %v539, 2
      %v541 = vadd.f32 %v539, %v540
      %v542 = vrot.slane %v541, 1
      %v543 = vadd.f32 %v541, %v542
      %v544 = vrot.slane %v517, 4
      %v545 = vadd.f32 %v517, %v544
      %v546 = vrot.slane %v545, 2
      %v547 = vadd.f32 %v545, %v546
      %v548 = vrot.slane %v547, 1
      %v549 = vadd.f32 %v547, %v548
      %v550 = vrot.slane %v519, 4
      %v551 = vadd.f32 %v519, %v550
      %v552 = vrot.slane %v551, 2
      %v553 = vadd.f32 %v551, %v552
      %v554 = vrot.slane %v553, 1
      %v555 = vadd.f32 %v553, %v554
      %v556 = vrot.slane %v521, 4
      %v557 = vadd.f32 %v521, %v556
      %v558 = vrot.slane %v557, 2
      %v559 = vadd.f32 %v557, %v558
      %v560 = vrot.slane %v559, 1
      %v561 = vadd.f32 %v559, %v560
      %v562 = vrot.slane %v523, 4
      %v563 = vadd.f32 %v523, %v562
      %v564 = vrot.slane %v563, 2
      %v565 = vadd.f32 %v563, %v564
      %v566 = vrot.slane %v565, 1
      %v567 = vadd.f32 %v565, %v566
      %v568 = vrot.slane %v525, 4
      %v569 = vadd.f32 %v525, %v568
      %v570 = vrot.slane %v569, 2
      %v571 = vadd.f32 %v569, %v570
      %v572 = vrot.slane %v571, 1
      %v573 = vadd.f32 %v571, %v572
      %v574 = vmul.f32 %v459, 0.0009765625
      %v575 = vmul.f32 %v465, 0.0009765625
      %v576 = vmul.f32 %v471, 0.0009765625
      %v577 = vmul.f32 %v477, 0.0009765625
      %v578 = vmul.f32 %v483, 0.0009765625
      %v579 = vmul.f32 %v489, 0.0009765625
      %v580 = vmul.f32 %v495, 0.0009765625
      %v581 = vmul.f32 %v501, 0.0009765625
      %v582 = vmul.f32 %v531, 0.0009765625
      %v583 = vmul.f32 %v537, 0.0009765625
      %v584 = vmul.f32 %v543, 0.0009765625
      %v585 = vmul.f32 %v549, 0.0009765625
      %v586 = vmul.f32 %v555, 0.0009765625
      %v587 = vmul.f32 %v561, 0.0009765625
      %v588 = vmul.f32 %v567, 0.0009765625
      %v589 = vmul.f32 %v573, 0.0009765625
      %v590 = vmul.f32 %v574, %v574
      %v591 = vmul.f32 %v575, %v575
      %v592 = vmul.f32 %v576, %v576
      %v593 = vmul.f32 %v577, %v577
      %v594 = vmul.f32 %v578, %v578
      %v595 = vmul.f32 %v579, %v579
      %v596 = vmul.f32 %v580, %v580
      %v597 = vmul.f32 %v581, %v581
      %v598 = vsub.f32 %v582, %v590
      %v599 = vsub.f32 %v583, %v591
      %v600 = vsub.f32 %v584, %v592
      %v601 = vsub.f32 %v585, %v593
      %v602 = vsub.f32 %v586, %v594
      %v603 = vsub.f32 %v587, %v595
      %v604 = vsub.f32 %v588, %v596
      %v605 = vsub.f32 %v589, %v597
      %v606 = vmax.f32 %v598, 0.0
      %v607 = vmax.f32 %v599, 0.0
      %v608 = vmax.f32 %v600, 0.0
      %v609 = vmax.f32 %v601, 0.0
      %v610 = vmax.f32 %v602, 0.0
      %v611 = vmax.f32 %v603, 0.0
      %v612 = vmax.f32 %v604, 0.0
      %v613 = vmax.f32 %v605, 0.0
      %v614 = vadd.f32 %v606, 1e-05
      %v615 = vadd.f32 %v607, 1e-05
      %v616 = vadd.f32 %v608, 1e-05
      %v617 = vadd.f32 %v609, 1e-05
      %v618 = vadd.f32 %v610, 1e-05
      %v619 = vadd.f32 %v611, 1e-05
      %v620 = vadd.f32 %v612, 1e-05
      %v621 = vadd.f32 %v613, 1e-05
      %v622 = vrsqrt.pop %v614
      %v623 = vrsqrt.pop %v615
      %v624 = vrsqrt.pop %v616
      %v625 = vrsqrt.pop %v617
      %v626 = vrsqrt.pop %v618
      %v627 = vrsqrt.pop %v619
      %v628 = vrsqrt.pop %v620
      %v629 = vrsqrt.pop %v621
      %v630 = vsub.f32 %v430, %v574
      %v631 = vsub.f32 %v431, %v575
      %v632 = vsub.f32 %v432, %v576
      %v633 = vsub.f32 %v433, %v577
      %v634 = vsub.f32 %v434, %v578
      %v635 = vsub.f32 %v435, %v579
      %v636 = vsub.f32 %v436, %v580
      %v637 = vsub.f32 %v437, %v581
      %v638 = vmul.f32 %v630, %v622
      %v639 = vmul.f32 %v631, %v623
      %v640 = vmul.f32 %v632, %v624
      %v641 = vmul.f32 %v633, %v625
      %v642 = vmul.f32 %v634, %v626
      %v643 = vmul.f32 %v635, %v627
      %v644 = vmul.f32 %v636, %v628
      %v645 = vmul.f32 %v637, %v629
      %v646 = vld [vmem:[#allocation2] sm:$0xff]
      %v647 = vld [vmem:[#allocation2 + $0x8] sm:$0xff]
      %v648 = vld [vmem:[#allocation2 + $0x10] sm:$0xff]
      %v649 = vld [vmem:[#allocation2 + $0x18] sm:$0xff]
      %v650 = vld [vmem:[#allocation2 + $0x20] sm:$0xff]
      %v651 = vld [vmem:[#allocation2 + $0x28] sm:$0xff]
      %v652 = vld [vmem:[#allocation2 + $0x30] sm:$0xff]
      %v653 = vld [vmem:[#allocation2 + $0x38] sm:$0xff]
      %v654 = vmul.f32 %v638, %v646
      %v655 = vmul.f32 %v639, %v647
      %v656 = vmul.f32 %v640, %v648
      %v657 = vmul.f32 %v641, %v649
      %v658 = vmul.f32 %v642, %v650
      %v659 = vmul.f32 %v643, %v651
      %v660 = vmul.f32 %v644, %v652
      %v661 = vmul.f32 %v645, %v653
      %v662 = vld [vmem:[#allocation3] sm:$0xff]
      %v663 = vld [vmem:[#allocation3 + $0x8] sm:$0xff]
      %v664 = vld [vmem:[#allocation3 + $0x10] sm:$0xff]
      %v665 = vld [vmem:[#allocation3 + $0x18] sm:$0xff]
      %v666 = vld [vmem:[#allocation3 + $0x20] sm:$0xff]
      %v667 = vld [vmem:[#allocation3 + $0x28] sm:$0xff]
      %v668 = vld [vmem:[#allocation3 + $0x30] sm:$0xff]
      %v669 = vld [vmem:[#allocation3 + $0x38] sm:$0xff]
      %v670 = vadd.f32 %v654, %v662
      %v671 = vadd.f32 %v655, %v663
      %v672 = vadd.f32 %v656, %v664
      %v673 = vadd.f32 %v657, %v665
      %v674 = vadd.f32 %v658, %v666
      %v675 = vadd.f32 %v659, %v667
      %v676 = vadd.f32 %v660, %v668
      %v677 = vadd.f32 %v661, %v669
      %v678 = vxor.u32 %v670, 2147483648
      %v679 = vxor.u32 %v671, 2147483648
      %v680 = vxor.u32 %v672, 2147483648
      %v681 = vxor.u32 %v673, 2147483648
      %v682 = vxor.u32 %v674, 2147483648
      %v683 = vxor.u32 %v675, 2147483648
      %v684 = vxor.u32 %v676, 2147483648
      %v685 = vxor.u32 %v677, 2147483648
      %v686 = vmul.f32 %v678, 1.442695
      %v687 = vpow.pop %v686
      %v688 = vmul.f32 %v679, 1.442695
      %v689 = vpow.pop %v688
      %v690 = vmul.f32 %v680, 1.442695
      %v691 = vpow.pop %v690
      %v692 = vmul.f32 %v681, 1.442695
      %v693 = vpow.pop %v692
      %v694 = vmul.f32 %v682, 1.442695
      %v695 = vpow.pop %v694
      %v696 = vmul.f32 %v683, 1.442695
      %v697 = vpow.pop %v696
      %v698 = vmul.f32 %v684, 1.442695
      %v699 = vpow.pop %v698
      %v700 = vmul.f32 %v685, 1.442695
      %v701 = vpow.pop %v700
      %v702 = vadd.f32 %v687, 1.0
      %v703 = vadd.f32 %v689, 1.0
      %v704 = vadd.f32 %v691, 1.0
      %v705 = vadd.f32 %v693, 1.0
      %v706 = vadd.f32 %v695, 1.0
      %v707 = vadd.f32 %v697, 1.0
      %v708 = vadd.f32 %v699, 1.0
      %v709 = vadd.f32 %v701, 1.0
      %v710 = vrcp.pop %v702
      %v711 = vmul.f32 1.0, %v710
      %v712 = vrcp.pop %v703
      %v713 = vmul.f32 1.0, %v712
      %v714 = vrcp.pop %v704
      %v715 = vmul.f32 1.0, %v714
      %v716 = vrcp.pop %v705
      %v717 = vmul.f32 1.0, %v716
      %v718 = vrcp.pop %v706
      %v719 = vmul.f32 1.0, %v718
      %v720 = vrcp.pop %v707
      %v721 = vmul.f32 1.0, %v720
      %v722 = vrcp.pop %v708
      %v723 = vmul.f32 1.0, %v722
      %v724 = vrcp.pop %v709
      %v725 = vmul.f32 1.0, %v724
      %v726 = vmul.f32 %v670, %v711
      %v727 = vmul.f32 %v671, %v713
      %v728 = vmul.f32 %v672, %v715
      %v729 = vmul.f32 %v673, %v717
      %v730 = vmul.f32 %v674, %v719
      %v731 = vmul.f32 %v675, %v721
      %v732 = vmul.f32 %v676, %v723
      %v733 = vmul.f32 %v677, %v725
      %734 = vst [vmem:[%s270] sm:$0xff] %v726
      %735 = vst [vmem:[%s270 + $0x8] sm:$0xff] %v727
      %736 = vst [vmem:[%s270 + $0x10] sm:$0xff] %v728
      %737 = vst [vmem:[%s270 + $0x18] sm:$0xff] %v729
      %738 = vst [vmem:[%s270 + $0x20] sm:$0xff] %v730
      %739 = vst [vmem:[%s270 + $0x28] sm:$0xff] %v731
      %740 = vst [vmem:[%s270 + $0x30] sm:$0xff] %v732
      %741 = vst [vmem:[%s270 + $0x38] sm:$0xff] %v733
      %s742 = smul.u32 8, %s19
      %p743 = scmp.lt.s32.totalorder %s18, 1
      %s744 = scalar_select %p743, %s18, 1
      %p745 = scmp.lt.s32.totalorder %s742, 7
      %s746 = scalar_select %p745, %s742, 7
      %s747 = smul.addr %s744, 8
      %s748 = sadd.s32 %s746, %s747
      %s749 = smul.addr %s748, 8
      %s750 = scalar_lea.vmem %s3, %s749
      // Predicated region
      $region33: #{gn_silu.2} parent=31 // pred_check
        %p751 = pneg %p134
      $region34: #{gn_silu.2} parent=31 // pred_check_branch
        %753 = sbr.rel (%p751) target = $region36
      $region35: #{gn_silu.2} parent=31 // pred_region
        %s754 = smul.u32 8, %s19
      $region36: #{gn_silu.2} parent=31 // pred_fallthru
        _
    $region32: #{gn_silu.2} parent=5 // pred_fallthru
      _
    %p755 = scmp.le.s32.totalorder 2, %s9
    // Predicated region
    $region37: #{gn_silu.2} parent=5 // pred_check
      %p756 = pneg %p755
    $region38: #{gn_silu.2} parent=5 // pred_check_branch
      %758 = sbr.rel (%p756) target = $region40
    $region39: #{gn_silu.2} parent=5 // pred_region
      %s759 = ssub.s32 %s9, 2
      // Predicated region
      $region41: #{gn_silu.2} parent=39 // pred_check
        %p760 = pneg %p140
      $region42: #{gn_silu.2} parent=39 // pred_check_branch
        %762 = sbr.rel (%p760) target = $region44
      $region43: #{gn_silu.2} parent=39 // pred_region
        %s763 = smul.u32 8, %s21
        %p764 = scmp.lt.s32.totalorder %s20, 1
        %s765 = scalar_select %p764, %s20, 1
        %p766 = scmp.lt.s32.totalorder %s763, 7
        %s767 = scalar_select %p766, %s763, 7
        %s768 = smul.addr %s765, 8
        %s769 = sadd.s32 %s767, %s768
        %s770 = smul.addr %s769, 8
        %s771 = scalar_lea.vmem %s3, %s770
      $region44: #{gn_silu.2} parent=39 // pred_fallthru
        _
    $region40: #{gn_silu.2} parent=5 // pred_fallthru
      _
  $region6: #{gn_silu.2} parent=0 // loop_footer
    %s13 = sadd.s32 1, %s9
  $region7: #{gn_silu.2} parent=0 // loop_footer_branch
    %8 = sbr.rel target = $region3
  $region8: #{gn_silu.2} parent=0 // loop_exit
    _

</llo_original>
